<compile_context>
chip_gen: v7x
topology: tpu7x:2x2x1
jax: 0.10.0
libtpu: 0.0.40
codegen_flags: <defaults>
</compile_context>

<pallas_src>
import math
import functools

import jax
import jax.numpy as jnp
from jax.experimental import pallas as pl
from jax.experimental.pallas import tpu as pltpu

_MIB = 1024 * 1024


def _round_up(x, m):
    return ((x + m - 1) // m) * m


def _dim_reduction_kernel(x_ref, v_ref, o_ref):
    # x_ref: (tm, D) row tile, v_ref: (D, tk) column tile of V,
    # o_ref: (tm, tk) output tile.  One MXU matmul, f32 accumulate.
    o_ref[...] = jnp.dot(
        x_ref[...], v_ref[...], preferred_element_type=jnp.float32
    ).astype(o_ref.dtype)


def _dim_reduction_kernel_dtiled(x_ref, v_ref, o_ref, acc_ref):
    # Reduction over D split across the last grid axis: accumulate in f32
    # VMEM scratch, write out on the final D step only.
    @pl.when(pl.program_id(2) == 0)
    def _():
        acc_ref[...] = jnp.zeros_like(acc_ref)

    acc_ref[...] += jnp.dot(
        x_ref[...], v_ref[...], preferred_element_type=jnp.float32
    )

    @pl.when(pl.program_id(2) == pl.num_programs(2) - 1)
    def _():
        o_ref[...] = acc_ref[...].astype(o_ref.dtype)


@functools.lru_cache(maxsize=1)
def _tpu_config():
    """(tile_budget_bytes, vmem_limit_bytes, multi_tensorcore, wide_mxu)."""
    vmem_cap = None
    try:
        info = pltpu.get_tpu_info()
        vmem_cap = int(getattr(info, "vmem_capacity_bytes"))
    except Exception:
        vmem_cap = None
    kind = ""
    try:
        kind = jax.devices()[0].device_kind.lower()
    except Exception:
        pass
    if vmem_cap is None:
        if "v7" in kind:
            vmem_cap = 64 * _MIB
        elif any(t in kind for t in ("v4", "v5", "v6")):
            vmem_cap = 128 * _MIB
        else:
            vmem_cap = 64 * _MIB  # unknown: be conservative (v7x-sized)

    if vmem_cap >= 96 * _MIB:            # v5e / v6e (128 MiB physical VMEM)
        tile_budget, vmem_limit = 80 * _MIB, 100 * _MIB
    else:                                 # v7x (64 MiB / TensorCore) or unknown
        tile_budget, vmem_limit = 36 * _MIB, 48 * _MIB

    multi_tc = any(t in kind for t in ("v7", "v4", "v5p"))   # 2 TensorCores
    wide_mxu = ("v6" in kind) or ("v7" in kind)               # 256-wide MXU N
    return tile_budget, vmem_limit, multi_tc, wide_mxu


def dim_reduction_forward(x, V, *, _force_d_block=None):
    """Pallas TPU equivalent of torch.matmul(x, V): x (..., D), V (D, K)."""
    x = jnp.asarray(x)
    V = jnp.asarray(V)
    D, K = V.shape
    assert x.shape[-1] == D, "contraction dim mismatch"

    lead_shape = x.shape[:-1]
    M = math.prod(lead_shape) if lead_shape else 1
    out_dtype = jnp.result_type(x.dtype, V.dtype)
    if M == 0:
        return jnp.zeros(lead_shape + (K,), dtype=out_dtype)
    x2d = x.reshape(M, D)

    x_bytes = jnp.dtype(x.dtype).itemsize
    v_bytes = jnp.dtype(V.dtype).itemsize
    o_bytes = jnp.dtype(out_dtype).itemsize

    tile_budget, vmem_limit, multi_tc, wide_mxu = _tpu_config()
    # Sublane packing: 8 rows for f32, 16 for bf16, 32 for int8/fp8.
    align = max(8, 32 // x_bytes, 32 // o_bytes)

    # --- Small K: zero-pad V's K dim to one full lane group (128) so output
    # stores are lane-dense (unmasked vst); padded columns sliced off at the
    # end.  V itself is tiny so the one-time pad is negligible.
    if K < 128:
        K_pad = 128
        V_in = jnp.pad(V, ((0, 0), (0, K_pad - K)))
    else:
        K_pad = K
        V_in = V

    # --- K tile: keep the whole V resident (fetched from HBM exactly once)
    # whenever it fits half the budget; only tile K when it doesn't.
    v_full_bytes = D * K_pad * v_bytes
    if v_full_bytes <= tile_budget // 2:
        tk = K_pad
    else:
        cands = (512, 384, 256, 128) if wide_mxu else (512, 256, 128)
        tk = None
        for c in cands:
            if c <= K_pad and 2 * D * c * v_bytes <= tile_budget // 2:
                tk = c
                break
        if tk is None:
            tk = 128  # huge D: D-tiling below shrinks the V tile footprint
    grid_k = pl.cdiv(K_pad, tk)

    # --- D tile: only tile the reduction dim when a full-D x tile would force
    # the row tile below ~256 rows under the budget.  D tiles must divide D
    # evenly (garbage in a ragged contraction block would corrupt results).
    td = D
    if _force_d_block is not None and 0 < _force_d_block < D and D % _force_d_block == 0:
        td = int(_force_d_block)
    else:
        tm_target = 256

        def _fits(td_, tm_):
            v_cnt = 1 if (grid_k == 1 and td_ == D) else 2
            acc = tm_ * tk * 4 if td_ != D else 0
            return (2 * tm_ * td_ * x_bytes + v_cnt * td_ * tk * v_bytes
                    + 2 * tm_ * tk * o_bytes + acc) <= tile_budget

        if not _fits(D, tm_target):
            for c in (2048, 1024, 512, 256):
                if c < D and D % c == 0 and _fits(c, tm_target):
                    td = c
                    break
    grid_d = D // td

    # --- M tile: largest row tile (<= 1024) whose footprint fits the budget.
    def _tile_bytes(tm_):
        v_cnt = 1 if (grid_k == 1 and grid_d == 1) else 2
        acc = tm_ * tk * 4 if grid_d > 1 else 0
        return (2 * tm_ * td * x_bytes + v_cnt * td * tk * v_bytes
                + 2 * tm_ * tk * o_bytes + acc)

    tm = max(align, min(1024, _round_up(M, align)))
    tm = _round_up(tm, align)
    while tm > align and _tile_bytes(tm) > tile_budget:
        tm = max(align, _round_up(tm // 2, align))

    grid_m = pl.cdiv(M, tm)
    # Only v7x-class chips have 2 TensorCores worth splitting for; single-TC
    # chips keep the biggest tile (a forced split is pure per-step overhead).
    if multi_tc and grid_m * grid_k < 2 and M > align:
        tm = max(align, _round_up(pl.cdiv(M, 2), align))
        grid_m = pl.cdiv(M, tm)
    # Rebalance so the ragged last row block isn't nearly empty.
    tm = max(align, _round_up(pl.cdiv(M, grid_m), align))
    grid_m = pl.cdiv(M, tm)

    # --- Grid order: when K is tiled (and D is not), make the cheaper operand
    # the streamed one.  (m outer, k inner) re-streams V grid_m times;
    # (k outer, m inner) re-streams x grid_k times.
    swap_mk = False
    if grid_k > 1 and grid_d == 1:
        traffic_mk = M * D * x_bytes + grid_m * D * K_pad * v_bytes
        traffic_km = grid_k * M * D * x_bytes + D * K_pad * v_bytes
        swap_mk = traffic_km < traffic_mk

    if grid_d > 1:
        x_streams, v_streams = grid_k, grid_m
    elif swap_mk:
        x_streams, v_streams = grid_k, 1
    else:
        x_streams, v_streams = 1, (grid_m if grid_k > 1 else 1)

    cost = pl.CostEstimate(
        flops=2 * M * D * K_pad,
        transcendentals=0,
        bytes_accessed=(x_streams * M * D * x_bytes
                        + v_streams * D * K_pad * v_bytes
                        + M * K_pad * o_bytes),
    )

    if grid_d > 1:
        grid = (grid_m, grid_k, grid_d)
        in_specs = [
            pl.BlockSpec((tm, td), lambda i, j, d: (i, d)),
            pl.BlockSpec((td, tk), lambda i, j, d: (d, j)),
        ]
        out_specs = pl.BlockSpec((tm, tk), lambda i, j, d: (i, j))
        kernel = _dim_reduction_kernel_dtiled
        scratch_shapes = (pltpu.VMEM((tm, tk), jnp.float32),)
        dims = ("parallel", "parallel", "arbitrary")
    elif swap_mk:
        grid = (grid_k, grid_m)
        in_specs = [
            pl.BlockSpec((tm, D), lambda j, i: (i, 0)),
            pl.BlockSpec((D, tk), lambda j, i: (0, j)),
        ]
        out_specs = pl.BlockSpec((tm, tk), lambda j, i: (i, j))
        kernel = _dim_reduction_kernel
        scratch_shapes = ()
        dims = ("parallel", "parallel")
    else:
        grid = (grid_m, grid_k)
        in_specs = [
            pl.BlockSpec((tm, D), lambda i, j: (i, 0)),
            pl.BlockSpec((D, tk), lambda i, j: (0, j)),
        ]
        out_specs = pl.BlockSpec((tm, tk), lambda i, j: (i, j))
        kernel = _dim_reduction_kernel
        scratch_shapes = ()
        dims = ("parallel", "parallel")

    out2d = pl.pallas_call(
        kernel,
        out_shape=jax.ShapeDtypeStruct((M, K_pad), out_dtype),
        grid=grid,
        in_specs=in_specs,
        out_specs=out_specs,
        scratch_shapes=scratch_shapes,
        compiler_params=pltpu.CompilerParams(
            dimension_semantics=dims,
            vmem_limit_bytes=vmem_limit,
        ),
        cost_estimate=cost,
    )(x2d, V_in)

    if K_pad != K:
        out2d = out2d[:, :K]
    return out2d.reshape(*lead_shape, K)


if __name__ == "__main__":
    key = jax.random.PRNGKey(0)
    k1, k2, k3, k4, k5, k6 = jax.random.split(key, 6)

    # Case 1: projection-head shape (batch=2, seq=8, hidden=32 -> K=16).
    # Small K exercises the lane-dense (K padded to 128) output path.
    B, S, D, K = 2, 8, 32, 16
    x = jax.random.normal(k1, (B, S, D), dtype=jnp.float32)
    V = jax.random.normal(k2, (D, K), dtype=jnp.float32)
    out = jax.block_until_ready(dim_reduction_forward(x, V))
    ref = jnp.matmul(x, V)
    assert out.shape == (B, S, K)
    assert jnp.allclose(out, ref, atol=1e-5, rtol=1e-5)

    # Case 2: ragged M (15 rows, not a tile multiple) with K >= 128 and the
    # whole V resident in VMEM -- no x padding, no output slicing in M.
    x2 = jax.random.normal(k3, (3, 5, 96), dtype=jnp.float32)
    V2 = jax.random.normal(k4, (96, 384), dtype=jnp.float32)
    out2 = jax.block_until_ready(dim_reduction_forward(x2, V2))
    ref2 = jnp.matmul(x2, V2)
    assert out2.shape == (3, 5, 384)
    assert jnp.allclose(out2, ref2, atol=1e-4, rtol=1e-4)

    # Case 3: force the D-tiled (reduction-axis accumulator) path at small shapes.
    x3 = jax.random.normal(k5, (2, 8, 256), dtype=jnp.float32)
    V3 = jax.random.normal(k6, (256, 64), dtype=jnp.float32)
    out3 = jax.block_until_ready(dim_reduction_forward(x3, V3, _force_d_block=128))
    ref3 = jnp.matmul(x3, V3)
    assert out3.shape == (2, 8, 64)
    assert jnp.allclose(out3, ref3, atol=1e-4, rtol=1e-4)

    print("KERNEL_OK")
</pallas_src>

<mosaic_0001>
module attributes {stable_mosaic.version = 11 : i64} {
  func.func @_dim_reduction_kernel(%arg0: i32, %arg1: i32, %arg2: memref<16x32xf32, #tpu.memory_space<vmem>>, %arg3: memref<32x128xf32, #tpu.memory_space<vmem>>, %arg4: memref<16x128xf32, #tpu.memory_space<vmem>>) attributes {dimension_semantics = [#tpu.dimension_semantics<parallel>, #tpu.dimension_semantics<parallel>], iteration_bounds = array<i64: 1, 1>, scalar_prefetch = 0 : i64, scratch_operands = 0 : i64, tpu.core_type = #tpu.core_type<tc>, window_params = [{transform_indices = @transform_0, window_bounds = array<i64: 16, 32>}, {transform_indices = @transform_1, window_bounds = array<i64: 32, 128>}, {transform_indices = @transform_2, window_bounds = array<i64: 16, 128>}]} {
    %c0 = arith.constant 0 : index
    %c0_0 = arith.constant 0 : index
    %0 = vector.load %arg2[%c0, %c0_0] : memref<16x32xf32, #tpu.memory_space<vmem>>, vector<16x32xf32>
    %c0_1 = arith.constant 0 : index
    %c0_2 = arith.constant 0 : index
    %1 = vector.load %arg3[%c0_1, %c0_2] : memref<32x128xf32, #tpu.memory_space<vmem>>, vector<32x128xf32>
    %cst = arith.constant dense<0.000000e+00> : vector<16x128xf32>
    %2 = tpu.matmul %0, %1, %cst {dimension_numbers = #tpu.dot_dimension_numbers<[1], [0], [0], [1], [0, 0, 1, 1], [], []>} : vector<16x32xf32>, vector<32x128xf32>, vector<16x128xf32> -> vector<16x128xf32>
    %c0_3 = arith.constant 0 : index
    %c0_4 = arith.constant 0 : index
    %3 = vector.load %arg4[%c0_3, %c0_4] : memref<16x128xf32, #tpu.memory_space<vmem>>, vector<16x128xf32>
    tpu.vector_store %arg4[%c0_3, %c0_4], %2 {strides = array<i32>} : memref<16x128xf32, #tpu.memory_space<vmem>>, vector<16x128xf32>,
    return
  }
  func.func @transform_0(%arg0: i32, %arg1: i32) -> (i32, i32) {
    %c0_i32 = arith.constant 0 : i32
    %c0_i32_0 = arith.constant 0 : i32
    return %arg0, %c0_i32 : i32, i32
  }
  func.func @transform_1(%arg0: i32, %arg1: i32) -> (i32, i32) {
    %c0_i32 = arith.constant 0 : i32
    %c0_i32_0 = arith.constant 0 : i32
    return %c0_i32, %arg1 : i32, i32
  }
  func.func @transform_2(%arg0: i32, %arg1: i32) -> (i32, i32) {
    %c0_i32 = arith.constant 0 : i32
    return %arg0, %arg1 : i32, i32
  }
}

</mosaic_0001>

<llo_original>
// kernel: tpu_custom_call.1
$region0: #{tpu_custom_call.1}
  #allocation0 [shape = 'u32[]', space=smem, size = 0x4, offset = 0x4, fixed_abs, tag = 'smem constant byte address 0x4 - core index']
  #allocation1 [shape = 'u32[144,128]{1,0:T(1,128)}', space=vmem, size = 0x12000, scoped, tag = 'internal scratch']
  %s0 = inlined_call_operand.hbm [shape: f32[16,32], index: 0, kind: input, shape index: {}]
  %s1 = inlined_call_operand.hbm [shape: f32[32,128], index: 1, kind: input, shape index: {}]
  %s2 = inlined_call_operand.hbm [shape: f32[16,128], index: 2, kind: output, shape index: {}]
  %s3 = sld [smem:[#allocation0]]
  $region26: #{tpu_custom_call.1} parent=0
    _
  %s5 = ssub.s32 1, %s3
  %s6 = scalar_select 0, %s5, %s3
  $region1: #{tpu_custom_call.1} parent=0
    #allocation2 [shape = 'u8[8192]{0}', space=vmem, size = 0x2000, scoped, tag = 'input window, operand 0, single buffered']
    #allocation3 [shape = 's32[1]{0}', space=sflag, size = 0x4, scoped, tag = 'scoped memory for tpu_custom_call.1']
    #allocation4 [shape = 's32[1]{0}', space=sflag, size = 0x4, scoped, tag = 'scoped memory for tpu_custom_call.1']
    #allocation5 [shape = 'u8[16384]{0}', space=vmem, size = 0x4000, scoped, tag = 'input window, operand 1, single buffered']
    #allocation6 [shape = 's32[1]{0}', space=sflag, size = 0x4, scoped, tag = 'scoped memory for tpu_custom_call.1']
    #allocation7 [shape = 'u8[8192]{0}', space=vmem, size = 0x2000, scoped, tag = 'output window, operand 0, single buffered']
    %7 = vsyncpa [#allocation3], 0
    %8 = vsyncpa [#allocation6], 0
    %9 = vsyncpa [#allocation4], 0
    // Predicated region
    $region2: #{tpu_custom_call.1} parent=1 // pred_check
      _
    $region3: #{tpu_custom_call.1} parent=1 // pred_check_branch
      %11 = sbr.rel (0) target = $region5
    $region4: #{tpu_custom_call.1} parent=1 // pred_region
      %s13 = ssub.s32 256, 256
      %14 = vsyncadd [#allocation3], %s13
      %s15 = sshll.u32 [#allocation2], 4
      %s16 = int_to_ptr.vmem [resolvable:$true] %s15
      %21 = dma.hbm_to_vmem [thread:$0]  %s0, 256, %s16, [#allocation3], 128, 128, 8
    $region5: #{tpu_custom_call.1} parent=1 // pred_fallthru
      _
    // Predicated region
    $region6: #{tpu_custom_call.1} parent=1 // pred_check
      _
    $region7: #{tpu_custom_call.1} parent=1 // pred_check_branch
      %23 = sbr.rel (0) target = $region9
    $region8: #{tpu_custom_call.1} parent=1 // pred_region
      %s25 = ssub.s32 512, 512
      %26 = vsyncadd [#allocation6], %s25
      %s27 = sshll.u32 [#allocation5], 4
      %s28 = int_to_ptr.vmem [resolvable:$true] %s27
      %33 = dma.hbm_to_vmem [thread:$0]  %s1, 512, %s28, [#allocation6], 128, 128, 8
    $region9: #{tpu_custom_call.1} parent=1 // pred_fallthru
      _
    // Predicated region
    $region10: #{tpu_custom_call.1} parent=1 // pred_check
      _
    $region11: #{tpu_custom_call.1} parent=1 // pred_check_branch
      %35 = sbr.rel (0) target = $region13
    $region12: #{tpu_custom_call.1} parent=1 // pred_region
      %36 = dma.done [#allocation3], 256
    $region13: #{tpu_custom_call.1} parent=1 // pred_fallthru
      _
    // Predicated region
    $region14: #{tpu_custom_call.1} parent=1 // pred_check
      _
    $region15: #{tpu_custom_call.1} parent=1 // pred_check_branch
      %38 = sbr.rel (0) target = $region17
    $region16: #{tpu_custom_call.1} parent=1 // pred_region
      %39 = dma.done [#allocation6], 512
    $region17: #{tpu_custom_call.1} parent=1 // pred_fallthru
      _
    %v40 = vld [vmem:[#allocation2] sm:$0xff]
    %v41 = vld [vmem:[#allocation2 + $0x8] sm:$0xff]
    %v42 = vld [vmem:[#allocation5] sm:$0xff]
    %v43 = vld [vmem:[#allocation5 + $0x8] sm:$0xff]
    %v44 = vld [vmem:[#allocation5 + $0x10] sm:$0xff]
    %v45 = vld [vmem:[#allocation5 + $0x18] sm:$0xff]
    %vm46 = vcmask 261120
    %v48 = vsel %vm46, %v40, 0
    %v51 = vsel %vm46, %v41, 0
    %53 = vmatprep.subr.mxu0 0.0
    %54 = vmatpush1.msra.mxu0 %v42
    %55 = vmatprep.subr.mxu0 0.0
    %56 = vmatpush1.msra.mxu0 %v43
    %57 = vmatprep.subr.mxu0 0.0
    %58 = vmatpush1.msra.mxu0 %v44
    %59 = vmatprep.subr.mxu0 0.0
    %60 = vmatpush1.msra.mxu0 %v45
    %61 = vmatprep.subr.mxu0 0.0
    %62 = vmatpush1.msra.mxu0 0.0
    %63 = vmatprep.subr.mxu0 0.0
    %64 = vmatpush1.msra.mxu0 0.0
    %65 = vmatprep.subr.mxu0 0.0
    %66 = vmatpush1.msra.mxu0 0.0
    %67 = vmatprep.subr.mxu0 0.0
    %68 = vmatpush1.msra.mxu0 0.0
    %69 = vmatprep.subr.mxu0 0.0
    %70 = vmatpush1.msra.mxu0 0.0
    %71 = vmatprep.subr.mxu0 0.0
    %72 = vmatpush1.msra.mxu0 0.0
    %73 = vmatprep.subr.mxu0 0.0
    %74 = vmatpush1.msra.mxu0 0.0
    %75 = vmatprep.subr.mxu0 0.0
    %76 = vmatpush1.msra.mxu0 0.0
    %77 = vmatprep.subr.mxu0 0.0
    %78 = vmatpush1.msra.mxu0 0.0
    %79 = vmatprep.subr.mxu0 0.0
    %80 = vmatpush1.msra.mxu0 0.0
    %81 = vmatprep.subr.mxu0 0.0
    %82 = vmatpush1.msra.mxu0 0.0
    %83 = vmatprep.subr.mxu0 0.0
    %84 = vmatpush1.msra.mxu0 0.0
    %85 = vmatprep.subr.mxu0 0.0
    %86 = vmatpush1.msra.mxu0 0.0
    %87 = vmatprep.subr.mxu0 0.0
    %88 = vmatpush1.msra.mxu0 0.0
    %89 = vmatprep.subr.mxu0 0.0
    %90 = vmatpush1.msra.mxu0 0.0
    %91 = vmatprep.subr.mxu0 0.0
    %92 = vmatpush1.msra.mxu0 0.0
    %93 = vmatprep.subr.mxu0 0.0
    %94 = vmatpush1.msra.mxu0 0.0
    %95 = vmatprep.subr.mxu0 0.0
    %96 = vmatpush1.msra.mxu0 0.0
    %97 = vmatprep.subr.mxu0 0.0
    %98 = vmatpush1.msra.mxu0 0.0
    %99 = vmatprep.subr.mxu0 0.0
    %100 = vmatpush1.msra.mxu0 0.0
    %101 = vmatprep.subr.mxu0 0.0
    %102 = vmatpush1.msra.mxu0 0.0
    %103 = vmatprep.subr.mxu0 0.0
    %104 = vmatpush1.msra.mxu0 0.0
    %105 = vmatprep.subr.mxu0 0.0
    %106 = vmatpush1.msra.mxu0 0.0
    %107 = vmatprep.subr.mxu0 0.0
    %108 = vmatpush1.msra.mxu0 0.0
    %109 = vmatprep.subr.mxu0 0.0
    %110 = vmatpush1.msra.mxu0 0.0
    %111 = vmatprep.subr.mxu0 0.0
    %112 = vmatpush1.msra.mxu0 0.0
    %113 = vmatprep.subr.mxu0 0.0
    %114 = vmatpush1.msra.mxu0 0.0
    %115 = vmatprep.subr.mxu0 0.0
    %116 = vmatpush1.msra.mxu0 0.0
    %117 = vmatprep.mubr.f32.mxu0 0.0
    %118 = vmatmul.mubr.f32.gmra.mrb[0].mxu0 %v48
    %v119 = vpop.f32.mrb[0].mxu0
    %v120 = vadd.f32 0.0, %v119
    %v121 = vpop.f32.mrb[0].mxu0
    %122 = vmatprep.mubr.f32.mxu0 0.0
    %123 = vmatmul.mubr.f32.gmra.mrb[0].mxu0 %v51
    %v124 = vpop.f32.mrb[0].mxu0
    %v125 = vadd.f32 0.0, %v124
    %v126 = vpop.f32.mrb[0].mxu0
    %127 = vdwg.mxu0
    %128 = vst [vmem:[#allocation7] sm:$0xff] %v120
    %129 = vst [vmem:[#allocation7 + $0x8] sm:$0xff] %v125
    // Predicated region
    $region18: #{tpu_custom_call.1} parent=1 // pred_check
      _
    $region19: #{tpu_custom_call.1} parent=1 // pred_check_branch
      %131 = sbr.rel (0) target = $region21
    $region20: #{tpu_custom_call.1} parent=1 // pred_region
      %s133 = ssub.s32 256, 256
      %134 = vsyncadd [#allocation4], %s133
      %s135 = sshll.u32 [#allocation7], 4
      %s136 = int_to_ptr.vmem [resolvable:$true] %s135
      %141 = dma.vmem_to_hbm [thread:$0]  %s136, 256, %s2, [#allocation4], 128, 128, 8
    $region21: #{tpu_custom_call.1} parent=1 // pred_fallthru
      _
    // Predicated region
    $region22: #{tpu_custom_call.1} parent=1 // pred_check
      _
    $region23: #{tpu_custom_call.1} parent=1 // pred_check_branch
      %143 = sbr.rel (0) target = $region25
    $region24: #{tpu_custom_call.1} parent=1 // pred_region
      %144 = dma.done [#allocation4], 256
    $region25: #{tpu_custom_call.1} parent=1 // pred_fallthru
      _
    %145 = vsyncpa [#allocation3], 1
    %146 = vsyncpa [#allocation6], 1
    %147 = vsyncpa [#allocation4], 1

</llo_original>
